<compile_context>
chip_gen: v6e
topology: v6e:2x2x1
jax: 0.10.0
libtpu: 0.0.40
codegen_flags: <defaults>
</compile_context>

<pallas_src>
import jax
import jax.numpy as jnp
from jax.experimental import pallas as pl
from jax.experimental.pallas import tpu as pltpu


def _cdiv(a, b):
    return -(-a // b)


def _object_model_kernel(x_ref, wh_ref, wt_ref, rh_ref, rt_ref, oh_ref, ot_ref):
    # x_ref : (bB, tS, D)   activation tile (input dtype)
    # w*_ref: (D, R)        projection weights (activation dtype)
    # r*_ref: (bB, 1, R)    precomputed (sub_feature @ W + b) rows, f32
    # o*_ref: (bB, tS, R)   sigmoid outputs (activation dtype)
    bb, ts, d = x_ref.shape
    r = wh_ref.shape[1]

    # Collapsing (bB, tS) is layout-preserving: the block picker guarantees
    # bB == 1 or tS % 8 == 0.
    x2d = x_ref[...].reshape(bb * ts, d)

    lh = jnp.dot(x2d, wh_ref[...], preferred_element_type=jnp.float32)
    lt = jnp.dot(x2d, wt_ref[...], preferred_element_type=jnp.float32)
    lh = lh.reshape(bb, ts, r) + rh_ref[...]          # (bB,1,R) broadcast
    lt = lt.reshape(bb, ts, r) + rt_ref[...]

    oh_ref[...] = jax.nn.sigmoid(lh).astype(oh_ref.dtype)
    ot_ref[...] = jax.nn.sigmoid(lt).astype(ot_ref.dtype)


def _vmem_budget():
    """Chip-aware scoped-VMEM budget, shared by the block picker and
    vmem_limit_bytes (~48 MiB on v7x, ~96 MiB on v5e/v6e)."""
    cap = 64 << 20                      # conservative fallback (v7x per-TC VMEM)
    try:
        info = pltpu.get_tpu_info()
        cap = int(getattr(info, "vmem_capacity_bytes", cap)) or cap
    except Exception:
        pass
    budget = min(3 * cap // 4, cap - (16 << 20))   # leave >=16 MiB headroom
    return int(max(budget, 16 << 20))


def _pick_blocks(B, S, D, R, itemsize, vmem_budget, target_rows=4096):
    """Pick (block_b, block_s).

    Grow block_s first (contiguous HBM reads), then block_b, targeting
    ~target_rows rows/step to amortize the ~0.35us per-grid-step overhead.
    Always verify the (lane/sublane padded) VMEM footprint against the
    budget, and keep the grid at >= 4 steps for megacore / dual-TC sharding.
    """
    lane, sub = 128, 8

    def need(bb, bs):
        d_l = _cdiv(D, lane) * lane
        r_l = _cdiv(R, lane) * lane                 # minor dim padded in VMEM
        bs_s = _cdiv(bs, sub) * sub
        inp = 2 * bb * bs_s * d_l * itemsize        # double-buffered x tile
        outs = 2 * 2 * bb * bs_s * r_l * itemsize   # two double-buffered outputs
        wts = 2 * 2 * _cdiv(D, sub) * sub * r_l * itemsize
        rows = 2 * 2 * bb * sub * r_l * 4
        return inp + outs + wts + rows

    cands = [c for c in (4096, 2048, 1024, 512, 256, 128, 64, 32, 16, 8) if c <= S]
    if not cands:
        cands = [S]                     # S < 8: full-dim block (exempt from /8 rule)
    block_s = cands[-1]
    for c in cands:
        if need(1, c) <= vmem_budget:
            block_s = c
            break

    block_b = 1
    if block_s % 8 == 0:                # keep the in-kernel reshape layout-preserving
        while (block_b < B and block_b * block_s < target_rows
               and need(block_b * 2, block_s) <= vmem_budget):
            block_b *= 2
        block_b = min(block_b, B)

    def steps(bb, bs):
        return _cdiv(B, bb) * _cdiv(S, bs)

    while steps(block_b, block_s) < 4:  # don't collapse the grid to 1-2 steps
        if block_b > 1:
            block_b = max(1, block_b // 2)
        elif block_s > 8 and block_s % 16 == 0:
            block_s //= 2
        else:
            break
    return block_b, block_s


def object_model_forward(bert_outputs, sub_head_batch, sub_tail_batch,
                         w_heads, b_heads, w_tails, b_tails):
    """Pallas implementation of ObjectModel.forward.

    bert_outputs: (B, S, D)  f32 or bf16 (bf16 from the producer halves the
                              dominant HBM read on this memory-bound kernel)
    sub_head_batch, sub_tail_batch: (B,) int indices into the sequence dim
    w_heads / w_tails: (D, R)  (== torch Linear weight, transposed)
    b_heads / b_tails: (1, R)
    returns (pred_obj_heads, pred_obj_tails), each (B, S, R) in the input dtype.
    """
    B, S, D = bert_outputs.shape
    R = w_heads.shape[1]
    x_dtype = bert_outputs.dtype
    itemsize = jnp.dtype(x_dtype).itemsize

    # ---- wrapper-side prep: tiny O(B*D) gather + O(B*R) rows, all f32 ------
    h = jnp.clip(sub_head_batch.astype(jnp.int32), 0, S - 1)
    t = jnp.clip(sub_tail_batch.astype(jnp.int32), 0, S - 1)
    bi = jnp.arange(B)
    sub_feature = 0.5 * (bert_outputs[bi, h].astype(jnp.float32)
                         + bert_outputs[bi, t].astype(jnp.float32))      # (B, D)

    rows_h = (sub_feature @ w_heads.astype(jnp.float32)
              + b_heads.astype(jnp.float32))[:, None, :]                 # (B,1,R) f32
    rows_t = (sub_feature @ w_tails.astype(jnp.float32)
              + b_tails.astype(jnp.float32))[:, None, :]

    # Weights in the activation dtype (bf16 MXU operands when the producer
    # hands over bf16 activations); accumulation stays f32 in the kernel.
    wh = w_heads.astype(x_dtype)
    wt = w_tails.astype(x_dtype)

    budget = _vmem_budget()
    block_b, block_s = _pick_blocks(B, S, D, R, itemsize, budget)
    grid = (_cdiv(B, block_b), _cdiv(S, block_s))

    grid_spec = pltpu.PrefetchScalarGridSpec(
        num_scalar_prefetch=0,
        grid=grid,
        in_specs=[
            pl.BlockSpec((block_b, block_s, D), lambda b, s: (b, s, 0)),
            pl.BlockSpec((D, R),                lambda b, s: (0, 0)),
            pl.BlockSpec((D, R),                lambda b, s: (0, 0)),
            pl.BlockSpec((block_b, 1, R),       lambda b, s: (b, 0, 0)),
            pl.BlockSpec((block_b, 1, R),       lambda b, s: (b, 0, 0)),
        ],
        out_specs=[
            pl.BlockSpec((block_b, block_s, R), lambda b, s: (b, s, 0)),
            pl.BlockSpec((block_b, block_s, R), lambda b, s: (b, s, 0)),
        ],
    )

    heads, tails = pl.pallas_call(
        _object_model_kernel,
        out_shape=(jax.ShapeDtypeStruct((B, S, R), x_dtype),
                   jax.ShapeDtypeStruct((B, S, R), x_dtype)),
        grid_spec=grid_spec,
        compiler_params=pltpu.CompilerParams(
            dimension_semantics=("parallel", "parallel"),
            vmem_limit_bytes=budget),
    )(bert_outputs, wh, wt, rows_h, rows_t)
    return heads, tails


def _reference_forward(bert_outputs, sub_head_batch, sub_tail_batch,
                       w_heads, b_heads, w_tails, b_tails):
    x = bert_outputs.astype(jnp.float32)
    B = x.shape[0]
    bi = jnp.arange(B)
    head_feat = x[bi, sub_head_batch]                        # (B, D)
    tail_feat = x[bi, sub_tail_batch]                        # (B, D)
    sub_feature = 0.5 * (head_feat + tail_feat)              # (B, D)
    tokens = x + sub_feature[:, None, :]                     # (B, S, D)
    heads = jax.nn.sigmoid(tokens @ w_heads + b_heads[None])
    tails = jax.nn.sigmoid(tokens @ w_tails + b_tails[None])
    return heads, tails


if __name__ == "__main__":
    def _make_inputs(key, B, S, D, R, dtype=jnp.float32):
        k_x, k_wh, k_bh, k_wt, k_bt, k_h, k_t = jax.random.split(key, 7)
        x = jax.random.normal(k_x, (B, S, D), dtype=jnp.float32).astype(dtype)
        sh = jax.random.randint(k_h, (B,), 0, S).astype(jnp.int32)
        st = jax.random.randint(k_t, (B,), 0, S).astype(jnp.int32)
        bound = 1.0 / (D ** 0.5)       # mimics nn.Linear fan-in uniform init
        wh = jax.random.uniform(k_wh, (D, R), jnp.float32, -bound, bound)
        bh = jax.random.uniform(k_bh, (1, R), jnp.float32, -bound, bound)
        wt = jax.random.uniform(k_wt, (D, R), jnp.float32, -bound, bound)
        bt = jax.random.uniform(k_bt, (1, R), jnp.float32, -bound, bound)
        return x, sh, st, wh, bh, wt, bt

    key = jax.random.PRNGKey(0)
    k1, k2, k3 = jax.random.split(key, 3)

    # 1) Small f32 case consistent with the module (batch=2, seq=8, D=32, R=4).
    args = _make_inputs(k1, 2, 8, 32, 4)
    heads, tails = object_model_forward(*args)
    jax.block_until_ready((heads, tails))
    ref_h, ref_t = _reference_forward(*args)
    assert heads.shape == (2, 8, 4) and tails.shape == (2, 8, 4)
    assert jnp.allclose(heads, ref_h, atol=2e-5, rtol=1e-5)
    assert jnp.allclose(tails, ref_t, atol=2e-5, rtol=1e-5)

    # 2) Non-divisible shapes: exercises pl.cdiv partial blocks / ragged S, B, R.
    args = _make_inputs(k2, 3, 300, 128, 5)
    heads, tails = object_model_forward(*args)
    jax.block_until_ready((heads, tails))
    ref_h, ref_t = _reference_forward(*args)
    assert heads.shape == (3, 300, 5) and tails.shape == (3, 300, 5)
    assert jnp.allclose(heads, ref_h, atol=2e-5, rtol=1e-5)
    assert jnp.allclose(tails, ref_t, atol=2e-5, rtol=1e-5)

    # 3) bf16 activations handed over by the producer (halves HBM read traffic).
    args = _make_inputs(k3, 2, 8, 32, 4, dtype=jnp.bfloat16)
    heads, tails = object_model_forward(*args)
    jax.block_until_ready((heads, tails))
    ref_h, ref_t = _reference_forward(*args)
    assert heads.dtype == jnp.bfloat16
    assert jnp.allclose(heads.astype(jnp.float32), ref_h, atol=5e-2)
    assert jnp.allclose(tails.astype(jnp.float32), ref_t, atol=5e-2)

    print("KERNEL_OK")
</pallas_src>

<mosaic_0001>
module attributes {stable_mosaic.version = 11 : i64} {
  func.func @_object_model_kernel(%arg0: i32, %arg1: i32, %arg2: memref<1x8x32xf32, #tpu.memory_space<vmem>>, %arg3: memref<32x4xf32, #tpu.memory_space<vmem>>, %arg4: memref<32x4xf32, #tpu.memory_space<vmem>>, %arg5: memref<1x1x4xf32, #tpu.memory_space<vmem>>, %arg6: memref<1x1x4xf32, #tpu.memory_space<vmem>>, %arg7: memref<1x8x4xf32, #tpu.memory_space<vmem>>, %arg8: memref<1x8x4xf32, #tpu.memory_space<vmem>>) attributes {dimension_semantics = [#tpu.dimension_semantics<parallel>, #tpu.dimension_semantics<parallel>], iteration_bounds = array<i64: 2, 1>, scalar_prefetch = 0 : i64, scratch_operands = 0 : i64, tpu.core_type = #tpu.core_type<tc>, window_params = [{transform_indices = @transform_0, window_bounds = array<i64: 1, 8, 32>}, {pipeline_mode = #tpu.pipeline_mode<synchronous>, transform_indices = @transform_1, window_bounds = array<i64: 32, 4>}, {pipeline_mode = #tpu.pipeline_mode<synchronous>, transform_indices = @transform_2, window_bounds = array<i64: 32, 4>}, {transform_indices = @transform_3, window_bounds = array<i64: 1, 1, 4>}, {transform_indices = @transform_4, window_bounds = array<i64: 1, 1, 4>}, {transform_indices = @transform_5, window_bounds = array<i64: 1, 8, 4>}, {transform_indices = @transform_6, window_bounds = array<i64: 1, 8, 4>}]} {
    %c0 = arith.constant 0 : index
    %c0_0 = arith.constant 0 : index
    %c0_1 = arith.constant 0 : index
    %0 = vector.load %arg2[%c0, %c0_0, %c0_1] : memref<1x8x32xf32, #tpu.memory_space<vmem>>, vector<1x8x32xf32>
    %1 = vector.shape_cast %0 : vector<1x8x32xf32> to vector<8x32xf32>
    %c0_2 = arith.constant 0 : index
    %c0_3 = arith.constant 0 : index
    %2 = vector.load %arg3[%c0_2, %c0_3] : memref<32x4xf32, #tpu.memory_space<vmem>>, vector<32x4xf32>
    %cst = arith.constant dense<0.000000e+00> : vector<8x4xf32>
    %3 = tpu.matmul %1, %2, %cst {dimension_numbers = #tpu.dot_dimension_numbers<[1], [0], [0], [1], [0, 0, 1, 1], [], []>} : vector<8x32xf32>, vector<32x4xf32>, vector<8x4xf32> -> vector<8x4xf32>
    %c0_4 = arith.constant 0 : index
    %c0_5 = arith.constant 0 : index
    %4 = vector.load %arg4[%c0_4, %c0_5] : memref<32x4xf32, #tpu.memory_space<vmem>>, vector<32x4xf32>
    %cst_6 = arith.constant dense<0.000000e+00> : vector<8x4xf32>
    %5 = tpu.matmul %1, %4, %cst_6 {dimension_numbers = #tpu.dot_dimension_numbers<[1], [0], [0], [1], [0, 0, 1, 1], [], []>} : vector<8x32xf32>, vector<32x4xf32>, vector<8x4xf32> -> vector<8x4xf32>
    %6 = vector.shape_cast %3 : vector<8x4xf32> to vector<1x8x4xf32>
    %c0_7 = arith.constant 0 : index
    %c0_8 = arith.constant 0 : index
    %c0_9 = arith.constant 0 : index
    %7 = vector.load %arg5[%c0_7, %c0_8, %c0_9] : memref<1x1x4xf32, #tpu.memory_space<vmem>>, vector<1x1x4xf32>
    %8 = vector.broadcast %7 : vector<1x1x4xf32> to vector<1x8x4xf32>
    %9 = arith.addf %6, %8 : vector<1x8x4xf32>
    %10 = vector.shape_cast %5 : vector<8x4xf32> to vector<1x8x4xf32>
    %c0_10 = arith.constant 0 : index
    %c0_11 = arith.constant 0 : index
    %c0_12 = arith.constant 0 : index
    %11 = vector.load %arg6[%c0_10, %c0_11, %c0_12] : memref<1x1x4xf32, #tpu.memory_space<vmem>>, vector<1x1x4xf32>
    %12 = vector.broadcast %11 : vector<1x1x4xf32> to vector<1x8x4xf32>
    %13 = arith.addf %10, %12 : vector<1x8x4xf32>
    %14 = arith.negf %9 : vector<1x8x4xf32>
    %15 = math.exp %14 : vector<1x8x4xf32>
    %cst_13 = arith.constant 1.000000e+00 : f32
    %16 = vector.broadcast %cst_13 : f32 to vector<1x8x4xf32>
    %17 = arith.addf %16, %15 : vector<1x8x4xf32>
    %18 = arith.divf %16, %17 : vector<1x8x4xf32>
    %c0_14 = arith.constant 0 : index
    %c0_15 = arith.constant 0 : index
    %c0_16 = arith.constant 0 : index
    %19 = vector.load %arg7[%c0_14, %c0_15, %c0_16] : memref<1x8x4xf32, #tpu.memory_space<vmem>>, vector<1x8x4xf32>
    tpu.vector_store %arg7[%c0_14, %c0_15, %c0_16], %18 {strides = array<i32>} : memref<1x8x4xf32, #tpu.memory_space<vmem>>, vector<1x8x4xf32>,
    %20 = arith.negf %13 : vector<1x8x4xf32>
    %21 = math.exp %20 : vector<1x8x4xf32>
    %cst_17 = arith.constant 1.000000e+00 : f32
    %22 = vector.broadcast %cst_17 : f32 to vector<1x8x4xf32>
    %23 = arith.addf %22, %21 : vector<1x8x4xf32>
    %24 = arith.divf %22, %23 : vector<1x8x4xf32>
    %c0_18 = arith.constant 0 : index
    %c0_19 = arith.constant 0 : index
    %c0_20 = arith.constant 0 : index
    %25 = vector.load %arg8[%c0_18, %c0_19, %c0_20] : memref<1x8x4xf32, #tpu.memory_space<vmem>>, vector<1x8x4xf32>
    tpu.vector_store %arg8[%c0_18, %c0_19, %c0_20], %24 {strides = array<i32>} : memref<1x8x4xf32, #tpu.memory_space<vmem>>, vector<1x8x4xf32>,
    return
  }
  func.func @transform_0(%arg0: i32, %arg1: i32) -> (i32, i32, i32) {
    %c0_i32 = arith.constant 0 : i32
    %c0_i32_0 = arith.constant 0 : i32
    return %arg0, %arg1, %c0_i32 : i32, i32, i32
  }
  func.func @transform_1(%arg0: i32, %arg1: i32) -> (i32, i32) {
    %c0_i32 = arith.constant 0 : i32
    %c0_i32_0 = arith.constant 0 : i32
    %c0_i32_1 = arith.constant 0 : i32
    return %c0_i32, %c0_i32_0 : i32, i32
  }
  func.func @transform_2(%arg0: i32, %arg1: i32) -> (i32, i32) {
    %c0_i32 = arith.constant 0 : i32
    %c0_i32_0 = arith.constant 0 : i32
    %c0_i32_1 = arith.constant 0 : i32
    return %c0_i32, %c0_i32_0 : i32, i32
  }
  func.func @transform_3(%arg0: i32, %arg1: i32) -> (i32, i32, i32) {
    %c0_i32 = arith.constant 0 : i32
    %c0_i32_0 = arith.constant 0 : i32
    %c0_i32_1 = arith.constant 0 : i32
    return %arg0, %c0_i32, %c0_i32_0 : i32, i32, i32
  }
  func.func @transform_4(%arg0: i32, %arg1: i32) -> (i32, i32, i32) {
    %c0_i32 = arith.constant 0 : i32
    %c0_i32_0 = arith.constant 0 : i32
    %c0_i32_1 = arith.constant 0 : i32
    return %arg0, %c0_i32, %c0_i32_0 : i32, i32, i32
  }
  func.func @transform_5(%arg0: i32, %arg1: i32) -> (i32, i32, i32) {
    %c0_i32 = arith.constant 0 : i32
    %c0_i32_0 = arith.constant 0 : i32
    return %arg0, %arg1, %c0_i32 : i32, i32, i32
  }
  func.func @transform_6(%arg0: i32, %arg1: i32) -> (i32, i32, i32) {
    %c0_i32 = arith.constant 0 : i32
    %c0_i32_0 = arith.constant 0 : i32
    return %arg0, %arg1, %c0_i32 : i32, i32, i32
  }
}

</mosaic_0001>

<llo_original>
// kernel: tpu_custom_call.1
$region0: #{tpu_custom_call.1}
  #allocation0 [shape = 'u32[]', space=smem, size = 0x4, offset = 0x4, fixed_abs, tag = 'smem constant byte address 0x4 - core index']
  #allocation1 [shape = 'u32[144,128]{1,0:T(1,128)}', space=vmem, size = 0x12000, scoped, tag = 'internal scratch']
  %s0 = inlined_call_operand.vmem [shape: f32[2,8,32], index: 0, kind: input, shape index: {}]
  %s1 = inlined_call_operand.vmem [shape: f32[32,4], index: 1, kind: input, shape index: {}]
  %s2 = inlined_call_operand.vmem [shape: f32[32,4], index: 2, kind: input, shape index: {}]
  %s3 = inlined_call_operand.vmem [shape: f32[2,1,4], index: 3, kind: input, shape index: {}]
  %s4 = inlined_call_operand.vmem [shape: f32[2,1,4], index: 4, kind: input, shape index: {}]
  %s5 = inlined_call_operand.vmem [shape: f32[2,8,4], index: 5, kind: output, shape index: {0}]
  %s6 = inlined_call_operand.vmem [shape: f32[2,8,4], index: 6, kind: output, shape index: {1}]
  %7 = xla_tuple %s5, %s6
  %s8 = sld [smem:[#allocation0]]
  $region61: #{tpu_custom_call.1} parent=0
    _
  %s10 = ssub.s32 1, %s8
  %s11 = scalar_select 0, %s10, %s8
  loop: start=0, step=1, limit=4
  $region2: #{tpu_custom_call.1} parent=0 // loop_pre_header
    _
  $region3: #{tpu_custom_call.1} parent=0 // loop_header
    %s13 = sphi 0, %s17
    %p14 = scmp.ge.s32.totalorder %s13, 4
    %s20 = sphi 0, %s32
    %s21 = sphi 0, %s28
    %s22 = sphi 0, %s20
    %s23 = sphi 0, %s21
    %s24 = sphi 0, %s22
    %s25 = sphi 0, %s23
    %s37 = sphi 0, %s39
    %s40 = sphi 0, %s37
    %s41 = sphi 0, %s40
    %s57 = sphi 0, %s41
    %s61 = sphi 0, %s61
    %s63 = sphi 0, %s61
    %s64 = sphi 0, %s63
    %s78 = sphi 0, %s64
    %s82 = sphi 0, %s82
    %s84 = sphi 0, %s82
    %s85 = sphi 0, %s84
    %s99 = sphi 0, %s85
    %s105 = sphi 0, %s107
    %s108 = sphi 0, %s105
    %s109 = sphi 0, %s108
    %s125 = sphi 0, %s109
    %s131 = sphi 0, %s133
    %s134 = sphi 0, %s131
    %s135 = sphi 0, %s134
    %s151 = sphi 0, %s135
    %s159 = sphi 0, %s161
    %s162 = sphi 0, %s159
    %s163 = sphi 0, %s162
    %s179 = sphi 0, %s163
    %s187 = sphi 0, %s189
    %s190 = sphi 0, %s187
    %s191 = sphi 0, %s190
    %s207 = sphi 0, %s191
  $region4: #{tpu_custom_call.1} parent=0 // loop_header_branch
    %16 = sbr.rel (%p14) target = $region8
  $region5: #{tpu_custom_call.1} parent=0 // loop_body
    %s18 = ssub.s32 %s13, 1
    %s19 = ssub.s32 %s13, 2
    %s26 = sadd.s32 1, %s21
    %p27 = scmp.ge.s32.totalorder %s26, 1
    %s28 = scalar_select %p27, 0, %s26
    %s29 = sadd.s32 1, %s20
    %s30 = scalar_select %p27, %s29, %s20
    %p31 = scmp.ge.s32.totalorder %s30, 2
    %s32 = scalar_select %p31, 0, %s30
    %s33 = ssub.s32 %s20, %s32
    %s34 = ssub.s32 %s21, %s28
    %s35 = sor.u32 %s33, %s34
    %p36 = scmp.eq.s32.totalorder %s35, 0
    %s38 = sadd.s32 %s37, 1
    %s39 = scalar_select %p36, %s37, %s38
    %p42 = pneg %p36
    %p43 = scmp.eq.s32.totalorder %s13, 1
    %p44 = por %p42, %p43
    %p45 = scmp.ne.s32.totalorder %s37, %s40
    %p46 = scmp.eq.s32.totalorder %s13, 0
    %p47 = por %p45, %p46
    %p48 = scmp.ne.s32.totalorder %s37, %s40
    %p49 = scmp.eq.s32.totalorder %s18, 1
    %p50 = por %p48, %p49
    %p51 = scmp.ne.s32.totalorder %s40, %s41
    %p52 = scmp.eq.s32.totalorder %s18, 0
    %p53 = por %p51, %p52
    %p54 = scmp.ne.s32.totalorder %s40, %s41
    %p55 = scmp.eq.s32.totalorder %s19, 1
    %p56 = por %p54, %p55
    %p58 = scmp.ne.s32.totalorder %s41, %s57
    %p59 = scmp.eq.s32.totalorder %s19, 0
    %p60 = por %p58, %p59
    %s62 = sadd.s32 %s61, 1
    %p65 = scmp.eq.s32.totalorder %s13, 1
    %p66 = scmp.ne.s32.totalorder %s61, %s63
    %p67 = scmp.eq.s32.totalorder %s13, 0
    %p68 = por %p66, %p67
    %p69 = scmp.ne.s32.totalorder %s61, %s63
    %p70 = scmp.eq.s32.totalorder %s18, 1
    %p71 = por %p69, %p70
    %p72 = scmp.ne.s32.totalorder %s63, %s64
    %p73 = scmp.eq.s32.totalorder %s18, 0
    %p74 = por %p72, %p73
    %p75 = scmp.ne.s32.totalorder %s63, %s64
    %p76 = scmp.eq.s32.totalorder %s19, 1
    %p77 = por %p75, %p76
    %p79 = scmp.ne.s32.totalorder %s64, %s78
    %p80 = scmp.eq.s32.totalorder %s19, 0
    %p81 = por %p79, %p80
    %s83 = sadd.s32 %s82, 1
    %p86 = scmp.eq.s32.totalorder %s13, 1
    %p87 = scmp.ne.s32.totalorder %s82, %s84
    %p88 = scmp.eq.s32.totalorder %s13, 0
    %p89 = por %p87, %p88
    %p90 = scmp.ne.s32.totalorder %s82, %s84
    %p91 = scmp.eq.s32.totalorder %s18, 1
    %p92 = por %p90, %p91
    %p93 = scmp.ne.s32.totalorder %s84, %s85
    %p94 = scmp.eq.s32.totalorder %s18, 0
    %p95 = por %p93, %p94
    %p96 = scmp.ne.s32.totalorder %s84, %s85
    %p97 = scmp.eq.s32.totalorder %s19, 1
    %p98 = por %p96, %p97
    %p100 = scmp.ne.s32.totalorder %s85, %s99
    %p101 = scmp.eq.s32.totalorder %s19, 0
    %p102 = por %p100, %p101
    %s103 = ssub.s32 %s20, %s32
    %p104 = scmp.eq.s32.totalorder %s103, 0
    %s106 = sadd.s32 %s105, 1
    %s107 = scalar_select %p104, %s105, %s106
    %p110 = pneg %p104
    %p111 = scmp.eq.s32.totalorder %s13, 1
    %p112 = por %p110, %p111
    %p113 = scmp.ne.s32.totalorder %s105, %s108
    %p114 = scmp.eq.s32.totalorder %s13, 0
    %p115 = por %p113, %p114
    %p116 = scmp.ne.s32.totalorder %s105, %s108
    %p117 = scmp.eq.s32.totalorder %s18, 1
    %p118 = por %p116, %p117
    %p119 = scmp.ne.s32.totalorder %s108, %s109
    %p120 = scmp.eq.s32.totalorder %s18, 0
    %p121 = por %p119, %p120
    %p122 = scmp.ne.s32.totalorder %s108, %s109
    %p123 = scmp.eq.s32.totalorder %s19, 1
    %p124 = por %p122, %p123
    %p126 = scmp.ne.s32.totalorder %s109, %s125
    %p127 = scmp.eq.s32.totalorder %s19, 0
    %p128 = por %p126, %p127
    %s129 = ssub.s32 %s20, %s32
    %p130 = scmp.eq.s32.totalorder %s129, 0
    %s132 = sadd.s32 %s131, 1
    %s133 = scalar_select %p130, %s131, %s132
    %p136 = pneg %p130
    %p137 = scmp.eq.s32.totalorder %s13, 1
    %p138 = por %p136, %p137
    %p139 = scmp.ne.s32.totalorder %s131, %s134
    %p140 = scmp.eq.s32.totalorder %s13, 0
    %p141 = por %p139, %p140
    %p142 = scmp.ne.s32.totalorder %s131, %s134
    %p143 = scmp.eq.s32.totalorder %s18, 1
    %p144 = por %p142, %p143
    %p145 = scmp.ne.s32.totalorder %s134, %s135
    %p146 = scmp.eq.s32.totalorder %s18, 0
    %p147 = por %p145, %p146
    %p148 = scmp.ne.s32.totalorder %s134, %s135
    %p149 = scmp.eq.s32.totalorder %s19, 1
    %p150 = por %p148, %p149
    %p152 = scmp.ne.s32.totalorder %s135, %s151
    %p153 = scmp.eq.s32.totalorder %s19, 0
    %p154 = por %p152, %p153
    %s155 = ssub.s32 %s20, %s32
    %s156 = ssub.s32 %s21, %s28
    %s157 = sor.u32 %s155, %s156
    %p158 = scmp.eq.s32.totalorder %s157, 0
    %s160 = sadd.s32 %s159, 1
    %s161 = scalar_select %p158, %s159, %s160
    %p164 = pneg %p158
    %p165 = scmp.eq.s32.totalorder %s13, 1
    %p166 = por %p164, %p165
    %p167 = scmp.ne.s32.totalorder %s159, %s162
    %p168 = scmp.eq.s32.totalorder %s13, 0
    %p169 = por %p167, %p168
    %p170 = scmp.ne.s32.totalorder %s159, %s162
    %p171 = scmp.eq.s32.totalorder %s18, 1
    %p172 = por %p170, %p171
    %p173 = scmp.ne.s32.totalorder %s162, %s163
    %p174 = scmp.eq.s32.totalorder %s18, 0
    %p175 = por %p173, %p174
    %p176 = scmp.ne.s32.totalorder %s162, %s163
    %p177 = scmp.eq.s32.totalorder %s19, 1
    %p178 = por %p176, %p177
    %p180 = scmp.ne.s32.totalorder %s163, %s179
    %p181 = scmp.eq.s32.totalorder %s19, 0
    %p182 = por %p180, %p181
    %s183 = ssub.s32 %s20, %s32
    %s184 = ssub.s32 %s21, %s28
    %s185 = sor.u32 %s183, %s184
    %p186 = scmp.eq.s32.totalorder %s185, 0
    %s188 = sadd.s32 %s187, 1
    %s189 = scalar_select %p186, %s187, %s188
    %p192 = pneg %p186
    %p193 = scmp.eq.s32.totalorder %s13, 1
    %p194 = por %p192, %p193
    %p195 = scmp.ne.s32.totalorder %s187, %s190
    %p196 = scmp.eq.s32.totalorder %s13, 0
    %p197 = por %p195, %p196
    %p198 = scmp.ne.s32.totalorder %s187, %s190
    %p199 = scmp.eq.s32.totalorder %s18, 1
    %p200 = por %p198, %p199
    %p201 = scmp.ne.s32.totalorder %s190, %s191
    %p202 = scmp.eq.s32.totalorder %s18, 0
    %p203 = por %p201, %p202
    %p204 = scmp.ne.s32.totalorder %s190, %s191
    %p205 = scmp.eq.s32.totalorder %s19, 1
    %p206 = por %p204, %p205
    %p208 = scmp.ne.s32.totalorder %s191, %s207
    %p209 = scmp.eq.s32.totalorder %s19, 0
    %p210 = por %p208, %p209
    %p211 = scmp.le.s32.totalorder 1, %s13
    %p212 = scmp.lt.s32.totalorder %s13, 3
    %p213 = pnand %p211, %p212
    %p214 = pneg %p213
    // Predicated region
    $region9: #{tpu_custom_call.1} parent=5 // pred_check
      _
    $region10: #{tpu_custom_call.1} parent=5 // pred_check_branch
      %216 = sbr.rel (%p213) target = $region12
    $region11: #{tpu_custom_call.1} parent=5 // pred_region
      %s217 = ssub.s32 %s13, 1
      // Predicated region
      $region13: #{tpu_custom_call.1} parent=11 // pred_check
        %p218 = pneg %p74
      $region14: #{tpu_custom_call.1} parent=11 // pred_check_branch
        %220 = sbr.rel (%p218) target = $region16
      $region15: #{tpu_custom_call.1} parent=11 // pred_region
        _
      $region16: #{tpu_custom_call.1} parent=11 // pred_fallthru
        _
      // Predicated region
      $region17: #{tpu_custom_call.1} parent=11 // pred_check
        %p221 = pneg %p95
      $region18: #{tpu_custom_call.1} parent=11 // pred_check_branch
        %223 = sbr.rel (%p221) target = $region20
      $region19: #{tpu_custom_call.1} parent=11 // pred_region
        _
      $region20: #{tpu_custom_call.1} parent=11 // pred_fallthru
        _
    $region12: #{tpu_custom_call.1} parent=5 // pred_fallthru
      _
    %p224 = scmp.lt.s32.totalorder %s13, 2
    // Predicated region
    $region21: #{tpu_custom_call.1} parent=5 // pred_check
      %p225 = pneg %p224
    $region22: #{tpu_custom_call.1} parent=5 // pred_check_branch
      %227 = sbr.rel (%p225) target = $region24
    $region23: #{tpu_custom_call.1} parent=5 // pred_region
      // Predicated region
      $region25: #{tpu_custom_call.1} parent=23 // pred_check
        %p228 = pneg %p47
      $region26: #{tpu_custom_call.1} parent=23 // pred_check_branch
        %230 = sbr.rel (%p228) target = $region28
      $region27: #{tpu_custom_call.1} parent=23 // pred_region
        %p231 = scmp.lt.s32.totalorder %s20, 1
        %s232 = scalar_select %p231, %s20, 1
        %p233 = scmp.lt.s32.totalorder %s21, 0
        %s234 = scalar_select %p233, %s21, 0
        %s235 = sadd.s32 %s234, %s232
        %s236 = smul.addr %s235, 8
        %s237 = scalar_lea.vmem %s0, %s236
      $region28: #{tpu_custom_call.1} parent=23 // pred_fallthru
        _
      // Predicated region
      $region29: #{tpu_custom_call.1} parent=23 // pred_check
        %p238 = pneg %p115
      $region30: #{tpu_custom_call.1} parent=23 // pred_check_branch
        %240 = sbr.rel (%p238) target = $region32
      $region31: #{tpu_custom_call.1} parent=23 // pred_region
        %p241 = scmp.lt.s32.totalorder %s20, 1
        %s242 = scalar_select %p241, %s20, 1
        %s243 = scalar_lea.vmem %s3, %s242
      $region32: #{tpu_custom_call.1} parent=23 // pred_fallthru
        _
      // Predicated region
      $region33: #{tpu_custom_call.1} parent=23 // pred_check
        %p244 = pneg %p141
      $region34: #{tpu_custom_call.1} parent=23 // pred_check_branch
        %246 = sbr.rel (%p244) target = $region36
      $region35: #{tpu_custom_call.1} parent=23 // pred_region
        %p247 = scmp.lt.s32.totalorder %s20, 1
        %s248 = scalar_select %p247, %s20, 1
        %s249 = scalar_lea.vmem %s4, %s248
      $region36: #{tpu_custom_call.1} parent=23 // pred_fallthru
        _
    $region24: #{tpu_custom_call.1} parent=5 // pred_fallthru
      _
    %p250 = scmp.le.s32.totalorder 1, %s13
    %p251 = scmp.lt.s32.totalorder %s13, 3
    %p252 = pnand %p250, %p251
    %p253 = pneg %p252
    // Predicated region
    $region37: #{tpu_custom_call.1} parent=5 // pred_check
      _
    $region38: #{tpu_custom_call.1} parent=5 // pred_check_branch
      %255 = sbr.rel (%p252) target = $region40
    $region39: #{tpu_custom_call.1} parent=5 // pred_region
      %s256 = ssub.s32 %s13, 1
      %p257 = scmp.lt.s32.totalorder %s22, 1
      %s258 = scalar_select %p257, %s22, 1
      %p259 = scmp.lt.s32.totalorder %s23, 0
      %s260 = scalar_select %p259, %s23, 0
      %s261 = sadd.s32 %s260, %s258
      %s262 = smul.addr %s261, 8
      %s263 = scalar_lea.vmem %s0, %s262
      %p264 = pneg %p53
      %p265 = pneg %p50
      %p266 = pneg %p74
      %p267 = pneg %p71
      %p268 = pneg %p95
      %p269 = pneg %p92
      %p270 = scmp.lt.s32.totalorder %s22, 1
      %s271 = scalar_select %p270, %s22, 1
      %s272 = scalar_lea.vmem %s3, %s271
      %p273 = pneg %p121
      %p274 = pneg %p118
      %p275 = scmp.lt.s32.totalorder %s22, 1
      %s276 = scalar_select %p275, %s22, 1
      %s277 = scalar_lea.vmem %s4, %s276
      %p278 = pneg %p147
      %p279 = pneg %p144
      %p280 = pneg %p175
      %p281 = pneg %p172
      %p282 = scmp.lt.s32.totalorder %s22, 1
      %s283 = scalar_select %p282, %s22, 1
      %p284 = scmp.lt.s32.totalorder %s23, 0
      %s285 = scalar_select %p284, %s23, 0
      %s286 = sadd.s32 %s285, %s283
      %s287 = smul.addr %s286, 8
      %s288 = scalar_lea.vmem %s5, %s287
      %p289 = pneg %p203
      %p290 = pneg %p200
      %p291 = scmp.lt.s32.totalorder %s22, 1
      %s292 = scalar_select %p291, %s22, 1
      %p293 = scmp.lt.s32.totalorder %s23, 0
      %s294 = scalar_select %p293, %s23, 0
      %s295 = sadd.s32 %s294, %s292
      %s296 = smul.addr %s295, 8
      %s297 = scalar_lea.vmem %s6, %s296
      %p298 = scmp.lt.s32.totalorder %s22, 1
      %s299 = scalar_select %p298, %s22, 1
      %p300 = scmp.lt.s32.totalorder %s23, 0
      %s301 = scalar_select %p300, %s23, 0
      %s302 = sadd.s32 %s301, %s299
      %s303 = smul.addr %s302, 8
      %s304 = scalar_lea.vmem %s0, %s303
      %p305 = scmp.lt.s32.totalorder %s22, 1
      %s306 = scalar_select %p305, %s22, 1
      %s307 = scalar_lea.vmem %s3, %s306
      %p308 = scmp.lt.s32.totalorder %s22, 1
      %s309 = scalar_select %p308, %s22, 1
      %s310 = scalar_lea.vmem %s4, %s309
      %p311 = scmp.lt.s32.totalorder %s22, 1
      %s312 = scalar_select %p311, %s22, 1
      %p313 = scmp.lt.s32.totalorder %s23, 0
      %s314 = scalar_select %p313, %s23, 0
      %s315 = sadd.s32 %s314, %s312
      %s316 = smul.addr %s315, 8
      %s317 = scalar_lea.vmem %s5, %s316
      %p318 = scmp.lt.s32.totalorder %s22, 1
      %s319 = scalar_select %p318, %s22, 1
      %p320 = scmp.lt.s32.totalorder %s23, 0
      %s321 = scalar_select %p320, %s23, 0
      %s322 = sadd.s32 %s321, %s319
      %s323 = smul.addr %s322, 8
      %s324 = scalar_lea.vmem %s6, %s323
      %v325 = vld [vmem:[%s304] sm:$0xff]
      %v326 = vld [vmem:[%s1] sm:$0xff]
      %v327 = vld [vmem:[%s1 + $0x8] sm:$0xff]
      %v328 = vld [vmem:[%s1 + $0x10] sm:$0xff]
      %v329 = vld [vmem:[%s1 + $0x18] sm:$0xff]
      %vm330 = vcmask 261120
      %v332 = vsel %vm330, %v325, 0
      %334 = vmatprep.subr.mxu0 0.0
      %335 = vmatpush1.msra.mxu0 0.0
      %336 = vmatprep.subr.mxu0 0.0
      %337 = vmatpush1.msra.mxu0 0.0
      %338 = vmatprep.subr.mxu0 0.0
      %339 = vmatpush1.msra.mxu0 0.0
      %340 = vmatprep.subr.mxu0 0.0
      %341 = vmatpush1.msra.mxu0 0.0
      %342 = vmatprep.subr.mxu0 0.0
      %343 = vmatpush1.msra.mxu0 0.0
      %344 = vmatprep.subr.mxu0 0.0
      %345 = vmatpush1.msra.mxu0 0.0
      %346 = vmatprep.subr.mxu0 0.0
      %347 = vmatpush1.msra.mxu0 0.0
      %348 = vmatprep.subr.mxu0 0.0
      %349 = vmatpush1.msra.mxu0 0.0
      %350 = vmatprep.subr.mxu0 0.0
      %351 = vmatpush1.msra.mxu0 0.0
      %352 = vmatprep.subr.mxu0 0.0
      %353 = vmatpush1.msra.mxu0 0.0
      %354 = vmatprep.subr.mxu0 0.0
      %355 = vmatpush1.msra.mxu0 0.0
      %356 = vmatprep.subr.mxu0 0.0
      %357 = vmatpush1.msra.mxu0 0.0
      %358 = vmatprep.subr.mxu0 0.0
      %359 = vmatpush1.msra.mxu0 %v329
      %360 = vmatprep.subr.mxu0 0.0
      %361 = vmatpush1.msra.mxu0 %v328
      %362 = vmatprep.subr.mxu0 0.0
      %363 = vmatpush1.msra.mxu0 %v327
      %364 = vmatprep.subr.mxu0 0.0
      %365 = vmatpush1.msra.mxu0 %v326
      %366 = vmatprep.subr.mxu0 0.0
      %367 = vmatpush2.msra.mxu0 0.0
      %368 = vmatprep.subr.mxu0 0.0
      %369 = vmatpush2.msra.mxu0 0.0
      %370 = vmatprep.subr.mxu0 0.0
      %371 = vmatpush2.msra.mxu0 0.0
      %372 = vmatprep.subr.mxu0 0.0
      %373 = vmatpush2.msra.mxu0 0.0
      %374 = vmatprep.subr.mxu0 0.0
      %375 = vmatpush2.msra.mxu0 0.0
      %376 = vmatprep.subr.mxu0 0.0
      %377 = vmatpush2.msra.mxu0 0.0
      %378 = vmatprep.subr.mxu0 0.0
      %379 = vmatpush2.msra.mxu0 0.0
      %380 = vmatprep.subr.mxu0 0.0
      %381 = vmatpush2.msra.mxu0 0.0
      %382 = vmatprep.subr.mxu0 0.0
      %383 = vmatpush2.msra.mxu0 0.0
      %384 = vmatprep.subr.mxu0 0.0
      %385 = vmatpush2.msra.mxu0 0.0
      %386 = vmatprep.subr.mxu0 0.0
      %387 = vmatpush2.msra.mxu0 0.0
      %388 = vmatprep.subr.mxu0 0.0
      %389 = vmatpush2.msra.mxu0 0.0
      %390 = vmatprep.subr.mxu0 0.0
      %391 = vmatpush2.msra.mxu0 0.0
      %392 = vmatprep.subr.mxu0 0.0
      %393 = vmatpush2.msra.mxu0 0.0
      %394 = vmatprep.subr.mxu0 0.0
      %395 = vmatpush2.msra.mxu0 0.0
      %396 = vmatprep.subr.mxu0 0.0
      %397 = vmatpush2.msra.mxu0 0.0
      %398 = vmatprep.mubr.f32.mxu0 0.0
      %399 = vmatmul.mubr.f32.gmra.mxu0 %v332
      %v400 = vpop.f32.mrf.mxu0
      %v401 = vadd.f32 0.0, %v400
      %v402 = vpop.f32.mrf.mxu0
      %403 = vdwg.mxu0
      %v404 = vld [vmem:[%s2] sm:$0xff]
      %v405 = vld [vmem:[%s2 + $0x8] sm:$0xff]
      %v406 = vld [vmem:[%s2 + $0x10] sm:$0xff]
      %v407 = vld [vmem:[%s2 + $0x18] sm:$0xff]
      %408 = vmatprep.subr.mxu0 0.0
      %409 = vmatpush1.msra.mxu0 0.0
      %410 = vmatprep.subr.mxu0 0.0
      %411 = vmatpush1.msra.mxu0 0.0
      %412 = vmatprep.subr.mxu0 0.0
      %413 = vmatpush1.msra.mxu0 0.0
      %414 = vmatprep.subr.mxu0 0.0
      %415 = vmatpush1.msra.mxu0 0.0
      %416 = vmatprep.subr.mxu0 0.0
      %417 = vmatpush1.msra.mxu0 0.0
      %418 = vmatprep.subr.mxu0 0.0
      %419 = vmatpush1.msra.mxu0 0.0
      %420 = vmatprep.subr.mxu0 0.0
      %421 = vmatpush1.msra.mxu0 0.0
      %422 = vmatprep.subr.mxu0 0.0
      %423 = vmatpush1.msra.mxu0 0.0
      %424 = vmatprep.subr.mxu0 0.0
      %425 = vmatpush1.msra.mxu0 0.0
      %426 = vmatprep.subr.mxu0 0.0
      %427 = vmatpush1.msra.mxu0 0.0
      %428 = vmatprep.subr.mxu0 0.0
      %429 = vmatpush1.msra.mxu0 0.0
      %430 = vmatprep.subr.mxu0 0.0
      %431 = vmatpush1.msra.mxu0 0.0
      %432 = vmatprep.subr.mxu0 0.0
      %433 = vmatpush1.msra.mxu0 %v407
      %434 = vmatprep.subr.mxu0 0.0
      %435 = vmatpush1.msra.mxu0 %v406
      %436 = vmatprep.subr.mxu0 0.0
      %437 = vmatpush1.msra.mxu0 %v405
      %438 = vmatprep.subr.mxu0 0.0
      %439 = vmatpush1.msra.mxu0 %v404
      %440 = vmatprep.subr.mxu0 0.0
      %441 = vmatpush2.msra.mxu0 0.0
      %442 = vmatprep.subr.mxu0 0.0
      %443 = vmatpush2.msra.mxu0 0.0
      %444 = vmatprep.subr.mxu0 0.0
      %445 = vmatpush2.msra.mxu0 0.0
      %446 = vmatprep.subr.mxu0 0.0
      %447 = vmatpush2.msra.mxu0 0.0
      %448 = vmatprep.subr.mxu0 0.0
      %449 = vmatpush2.msra.mxu0 0.0
      %450 = vmatprep.subr.mxu0 0.0
      %451 = vmatpush2.msra.mxu0 0.0
      %452 = vmatprep.subr.mxu0 0.0
      %453 = vmatpush2.msra.mxu0 0.0
      %454 = vmatprep.subr.mxu0 0.0
      %455 = vmatpush2.msra.mxu0 0.0
      %456 = vmatprep.subr.mxu0 0.0
      %457 = vmatpush2.msra.mxu0 0.0
      %458 = vmatprep.subr.mxu0 0.0
      %459 = vmatpush2.msra.mxu0 0.0
      %460 = vmatprep.subr.mxu0 0.0
      %461 = vmatpush2.msra.mxu0 0.0
      %462 = vmatprep.subr.mxu0 0.0
      %463 = vmatpush2.msra.mxu0 0.0
      %464 = vmatprep.subr.mxu0 0.0
      %465 = vmatpush2.msra.mxu0 0.0
      %466 = vmatprep.subr.mxu0 0.0
      %467 = vmatpush2.msra.mxu0 0.0
      %468 = vmatprep.subr.mxu0 0.0
      %469 = vmatpush2.msra.mxu0 0.0
      %470 = vmatprep.subr.mxu0 0.0
      %471 = vmatpush2.msra.mxu0 0.0
      %472 = vmatprep.mubr.f32.mxu0 0.0
      %473 = vmatmul.mubr.f32.gmra.mxu0 %v332
      %v474 = vpop.f32.mrf.mxu0
      %v475 = vadd.f32 0.0, %v474
      %v476 = vpop.f32.mrf.mxu0
      %477 = vdwg.mxu0
      %v478 = vld [vmem:[%s307] sm:$0x1]
      %v480 = vlaneseq
      %v481 = vshrl.u32 %v480, 7
      %v482 = vsub.s32 0, %v481
      %v483 = vrot.slane %v478, %v482
      %v485 = vadd.f32 %v401, %v483
      %v486 = vld [vmem:[%s310] sm:$0x1]
      %v488 = vlaneseq
      %v489 = vshrl.u32 %v488, 7
      %v490 = vsub.s32 0, %v489
      %v491 = vrot.slane %v486, %v490
      %v493 = vadd.f32 %v475, %v491
      %v494 = vxor.u32 %v485, 2147483648
      %v495 = vmul.f32 %v494, 1.442695
      %v496 = vpow.pop %v495
      %v497 = vadd.f32 %v496, 1.0
      %v498 = vrcp.pop %v497
      %v499 = vmul.f32 1.0, %v498
      %vm500 = vcmask 31744
      %501 = vst.msk [vmem:[%s317] sm:$0xff] %vm500, %v499
      %v502 = vxor.u32 %v493, 2147483648
      %v503 = vmul.f32 %v502, 1.442695
      %v504 = vpow.pop %v503
      %v505 = vadd.f32 %v504, 1.0
      %v506 = vrcp.pop %v505
      %v507 = vmul.f32 1.0, %v506
      %508 = vst.msk [vmem:[%s324] sm:$0xff] %vm500, %v507
      %p509 = scmp.lt.s32.totalorder %s22, 1
      %s510 = scalar_select %p509, %s22, 1
      %p511 = scmp.lt.s32.totalorder %s23, 0
      %s512 = scalar_select %p511, %s23, 0
      %s513 = sadd.s32 %s512, %s510
      %s514 = smul.addr %s513, 8
      %s515 = scalar_lea.vmem %s5, %s514
      %p516 = scmp.lt.s32.totalorder %s22, 1
      %s517 = scalar_select %p516, %s22, 1
      %p518 = scmp.lt.s32.totalorder %s23, 0
      %s519 = scalar_select %p518, %s23, 0
      %s520 = sadd.s32 %s519, %s517
      %s521 = smul.addr %s520, 8
      %s522 = scalar_lea.vmem %s6, %s521
      // Predicated region
      $region41: #{tpu_custom_call.1} parent=39 // pred_check
        %p523 = pneg %p172
      $region42: #{tpu_custom_call.1} parent=39 // pred_check_branch
        %525 = sbr.rel (%p523) target = $region44
      $region43: #{tpu_custom_call.1} parent=39 // pred_region
        _
      $region44: #{tpu_custom_call.1} parent=39 // pred_fallthru
        _
      // Predicated region
      $region45: #{tpu_custom_call.1} parent=39 // pred_check
        %p526 = pneg %p200
      $region46: #{tpu_custom_call.1} parent=39 // pred_check_branch
        %528 = sbr.rel (%p526) target = $region48
      $region47: #{tpu_custom_call.1} parent=39 // pred_region
        _
      $region48: #{tpu_custom_call.1} parent=39 // pred_fallthru
        _
    $region40: #{tpu_custom_call.1} parent=5 // pred_fallthru
      _
    %p529 = scmp.le.s32.totalorder 2, %s13
    // Predicated region
    $region49: #{tpu_custom_call.1} parent=5 // pred_check
      %p530 = pneg %p529
    $region50: #{tpu_custom_call.1} parent=5 // pred_check_branch
      %532 = sbr.rel (%p530) target = $region52
    $region51: #{tpu_custom_call.1} parent=5 // pred_region
      %s533 = ssub.s32 %s13, 2
      // Predicated region
      $region53: #{tpu_custom_call.1} parent=51 // pred_check
        %p534 = pneg %p178
      $region54: #{tpu_custom_call.1} parent=51 // pred_check_branch
        %536 = sbr.rel (%p534) target = $region56
      $region55: #{tpu_custom_call.1} parent=51 // pred_region
        %p537 = scmp.lt.s32.totalorder %s24, 1
        %s538 = scalar_select %p537, %s24, 1
        %p539 = scmp.lt.s32.totalorder %s25, 0
        %s540 = scalar_select %p539, %s25, 0
        %s541 = sadd.s32 %s540, %s538
        %s542 = smul.addr %s541, 8
        %s543 = scalar_lea.vmem %s5, %s542
      $region56: #{tpu_custom_call.1} parent=51 // pred_fallthru
        _
      // Predicated region
      $region57: #{tpu_custom_call.1} parent=51 // pred_check
        %p544 = pneg %p206
      $region58: #{tpu_custom_call.1} parent=51 // pred_check_branch
        %546 = sbr.rel (%p544) target = $region60
      $region59: #{tpu_custom_call.1} parent=51 // pred_region
        %p547 = scmp.lt.s32.totalorder %s24, 1
        %s548 = scalar_select %p547, %s24, 1
        %p549 = scmp.lt.s32.totalorder %s25, 0
        %s550 = scalar_select %p549, %s25, 0
        %s551 = sadd.s32 %s550, %s548
        %s552 = smul.addr %s551, 8
        %s553 = scalar_lea.vmem %s6, %s552
      $region60: #{tpu_custom_call.1} parent=51 // pred_fallthru
        _
    $region52: #{tpu_custom_call.1} parent=5 // pred_fallthru
      _
  $region6: #{tpu_custom_call.1} parent=0 // loop_footer
    %s17 = sadd.s32 1, %s13
  $region7: #{tpu_custom_call.1} parent=0 // loop_footer_branch
    %12 = sbr.rel target = $region3
  $region8: #{tpu_custom_call.1} parent=0 // loop_exit
    _

</llo_original>
